<compile_context>
chip_gen: v5e
topology: v5e:2x2
jax: 0.10.0
libtpu: 0.0.40
codegen_flags: <defaults>
</compile_context>

<pallas_src>
import functools
import math

import numpy as np
import jax
import jax.numpy as jnp
from jax.experimental import pallas as pl
from jax.experimental.pallas import tpu as pltpu


# ----------------------------------------------------------------------------
# Cell-anchor generation (deterministic buffer setup, plain numpy glue).
# Mirrors maskrcnn_benchmark's generate_anchors exactly.
# ----------------------------------------------------------------------------
def _whctrs(anchor):
    w = anchor[2] - anchor[0] + 1
    h = anchor[3] - anchor[1] + 1
    x_ctr = anchor[0] + 0.5 * (w - 1)
    y_ctr = anchor[1] + 0.5 * (h - 1)
    return w, h, x_ctr, y_ctr


def _mkanchors(ws, hs, x_ctr, y_ctr):
    ws = ws[:, np.newaxis]
    hs = hs[:, np.newaxis]
    return np.hstack((x_ctr - 0.5 * (ws - 1), y_ctr - 0.5 * (hs - 1),
                      x_ctr + 0.5 * (ws - 1), y_ctr + 0.5 * (hs - 1)))


def _ratio_enum(anchor, ratios):
    w, h, x_ctr, y_ctr = _whctrs(anchor)
    size = w * h
    size_ratios = size / ratios
    ws = np.round(np.sqrt(size_ratios))
    hs = np.round(ws * ratios)
    return _mkanchors(ws, hs, x_ctr, y_ctr)


def _scale_enum(anchor, scales):
    w, h, x_ctr, y_ctr = _whctrs(anchor)
    ws = w * scales
    hs = h * scales
    return _mkanchors(ws, hs, x_ctr, y_ctr)


def generate_anchors(stride=16, sizes=(32, 64, 128, 256, 512),
                     aspect_ratios=(0.5, 1, 2)):
    scales = np.array(sizes, dtype=np.float64) / stride
    ratios = np.array(aspect_ratios, dtype=np.float64)
    anchor = np.array([1, 1, stride, stride], dtype=np.float64) - 1
    anchors = _ratio_enum(anchor, ratios)
    anchors = np.vstack([_scale_enum(anchors[i, :], scales)
                         for i in range(anchors.shape[0])])
    return anchors.astype(np.float32)


def _round_up(x, m):
    return (x + m - 1) // m * m


# ----------------------------------------------------------------------------
# Tile-size heuristic (per TPU generation).
# ----------------------------------------------------------------------------
def _device_params():
    """Return (HBM bytes/s, tensorcores-per-chip) for the tile heuristic."""
    kind = ""
    try:
        kind = jax.devices()[0].device_kind.lower()
    except Exception:
        pass
    if "v5 lite" in kind or "v5e" in kind or "v5lite" in kind:
        return 8.2e11, 1
    if "v5" in kind:                      # v5p
        return 1.2e12, 1
    if "v6" in kind:
        return 1.3e12, 1
    if "v7" in kind or "7x" in kind:
        return 3.2e12, 2
    return 1.3e12, 1


def _pick_tile(hws, A, num_images, emit_vis):
    """cost(tile) = ceil(steps/n_tc)*0.35us + padded_bytes/BW; tile % 256 == 0."""
    bw, n_tc = _device_params()
    bytes_per_pos = 4 * A * 4 + (num_images * A if emit_vis else 0)
    step_s = 0.35e-6
    cands = {256, 512, 1024, 2048, 4096, 8192, 16384,
             _round_up(max(hws), 256), _round_up(sum(hws), 256)}
    cands = sorted(c for c in cands if 256 <= c <= 32768)
    best_tile, best_cost = None, None
    for t in cands:
        n_tiles = sum(-(-hw // t) for hw in hws)
        padded = n_tiles * t
        cost = (-(-n_tiles // n_tc)) * step_s + padded * bytes_per_pos / bw
        if best_cost is None or cost < best_cost:
            best_cost, best_tile = cost, t
    return best_tile


# ----------------------------------------------------------------------------
# Fused Pallas kernel: all levels, one launch, 1-D grid over HW tiles.
# ----------------------------------------------------------------------------
def _fused_anchor_kernel(img_hw_ref, level_ref, stride_ref, w_ref, off_ref,
                         base_il_ref, *rest, A, k_pos, lane_w, tile,
                         num_images, straddle_thresh, emit_vis):
    # img_hw_ref  : SMEM int32 (num_images, 2)   (height, width) per image
    # level_ref   : SMEM int32 (num_tiles,)      consumed only by the index_maps
    # stride_ref  : SMEM int32 (num_tiles,)      per-tile anchor stride
    # w_ref       : SMEM int32 (num_tiles,)      per-tile feature-map width
    # off_ref     : SMEM int32 (num_tiles,)      per-tile in-level element offset
    # base_il_ref : VMEM f32 (1, 1, lane_w)      interleaved cell anchors (this level)
    # base_cm_ref : VMEM f32 (1, 4A, 1)          coord-major cell anchors (vis only)
    # anchors_ref : VMEM f32 (tile//k_pos, lane_w)   interleaved anchors output
    # vis_ref     : VMEM i8  (num_images*A, tile)    merged visibility output
    del level_ref
    if emit_vis:
        base_cm_ref, anchors_ref, vis_ref = rest
    else:
        (anchors_ref,) = rest
        base_cm_ref = vis_ref = None

    four_a = 4 * A
    n_rows = tile // k_pos
    t = pl.program_id(0)
    stride = stride_ref[t].astype(jnp.float32)
    w_f = w_ref[t].astype(jnp.float32)
    off = off_ref[t]

    # ---- interleaved anchors: lane l encodes (p, a, c) with l = p*4A + a*4 + c.
    # Row-major flattening of this block is exactly the PyTorch (HW*A, 4) order,
    # so the wrapper only needs a contiguous slice + reshape (no transpose).
    lane = jax.lax.broadcasted_iota(jnp.int32, (1, lane_w), 1).astype(jnp.float32)
    p_in_row = jnp.floor((lane + 0.5) * (1.0 / four_a))        # 0 .. k_pos-1
    rem = lane - p_in_row * four_a                             # a*4 + c
    c = rem - jnp.floor((rem + 0.5) * 0.25) * 4.0              # 0 .. 3
    xm = ((c == 0.0) | (c == 2.0)).astype(jnp.float32)         # (1, lane_w)
    ym = 1.0 - xm

    row0 = off + jax.lax.broadcasted_iota(jnp.int32, (n_rows, 1), 0) * k_pos
    pos = row0.astype(jnp.float32) + p_in_row                  # (n_rows, lane_w)
    gy = jnp.floor((pos + 0.5) / w_f)      # exact while H*W < 2^21 (asserted host-side)
    gx = pos - gy * w_f
    shift = (gx * xm + gy * ym) * stride
    anchors_ref[...] = base_il_ref[0] + shift                  # single lane-dense store

    # ---- visibility: one merged (num_images*A, tile) int8 store ---------------
    if emit_vis:
        thr = jnp.float32(straddle_thresh)
        pos1 = (off + jax.lax.broadcasted_iota(jnp.int32, (1, tile), 1)
                ).astype(jnp.float32)
        gy1 = jnp.floor((pos1 + 0.5) / w_f)
        gx1 = pos1 - gy1 * w_f
        sx = gx1 * stride                                      # (1, tile)
        sy = gy1 * stride
        base_cm = base_cm_ref[0]                               # (4A, 1), rows c*A + a
        x1 = base_cm[0 * A:1 * A] + sx                         # (A, tile)
        y1 = base_cm[1 * A:2 * A] + sy
        x2 = base_cm[2 * A:3 * A] + sx
        y2 = base_cm[3 * A:4 * A] + sy
        base_ok = (x1 >= -thr) & (y1 >= -thr)   # image-independent half, hoisted
        flags = []
        for i in range(num_images):             # static unroll over the batch
            img_h = img_hw_ref[i, 0].astype(jnp.float32)
            img_w = img_hw_ref[i, 1].astype(jnp.float32)
            ok = base_ok & (x2 < img_w + thr) & (y2 < img_h + thr)
            flags.append(ok.astype(jnp.int8))
        vis_ref[...] = jnp.concatenate(flags, axis=0)          # one merged store


# ----------------------------------------------------------------------------
# Build one jitted function: pallas_call + layout fix-up fused in a single XLA
# program (no eager HBM round-trips between the kernel and the wrapper).
# ----------------------------------------------------------------------------
def _build_fused_fn(grid_sizes, strides, A, num_images, straddle_thresh):
    num_levels = min(len(grid_sizes), len(strides))
    grid_sizes = tuple(grid_sizes[:num_levels])
    strides = tuple(strides[:num_levels])
    hws = [int(h) * int(w) for (h, w) in grid_sizes]
    if max(hws) >= (1 << 21):
        raise ValueError("feature map H*W too large for the exact f32 row/col trick")

    four_a = 4 * A
    k_pos = 128 // math.gcd(four_a, 128)       # positions per sublane row
    lane_w = four_a * k_pos                    # lane width (multiple of 128)
    emit_vis = straddle_thresh >= 0
    tile = _pick_tile(hws, A, num_images, emit_vis)   # multiple of 256
    n_rows = tile // k_pos

    # Static per-tile schedule (host side).
    tile_level, tile_stride, tile_w, tile_off, level_tile_start = [], [], [], [], []
    for lvl, ((h, w), s) in enumerate(zip(grid_sizes, strides)):
        level_tile_start.append(len(tile_level))
        for j in range(-(-hws[lvl] // tile)):
            tile_level.append(lvl)
            tile_stride.append(int(s))
            tile_w.append(int(w))
            tile_off.append(j * tile)
    num_tiles = len(tile_level)
    padded_total = num_tiles * tile
    level_starts = [ts * tile for ts in level_tile_start]

    lvl_a = jnp.asarray(np.asarray(tile_level, np.int32))
    str_a = jnp.asarray(np.asarray(tile_stride, np.int32))
    w_a = jnp.asarray(np.asarray(tile_w, np.int32))
    off_a = jnp.asarray(np.asarray(tile_off, np.int32))

    kernel = functools.partial(
        _fused_anchor_kernel, A=A, k_pos=k_pos, lane_w=lane_w, tile=tile,
        num_images=num_images, straddle_thresh=float(straddle_thresh),
        emit_vis=emit_vis)

    anchors_shape = jax.ShapeDtypeStruct((num_tiles * n_rows, lane_w), jnp.float32)
    anchors_spec = pl.BlockSpec((n_rows, lane_w), lambda t, *_: (t, 0))
    in_specs = [pl.BlockSpec((1, 1, lane_w),
                             lambda t, img, lvl, s, w, o: (lvl[t], 0, 0))]
    if emit_vis:
        in_specs.append(pl.BlockSpec((1, four_a, 1),
                                     lambda t, img, lvl, s, w, o: (lvl[t], 0, 0)))
        out_shape = (anchors_shape,
                     jax.ShapeDtypeStruct((num_images * A, padded_total), jnp.int8))
        out_specs = (anchors_spec,
                     pl.BlockSpec((num_images * A, tile), lambda t, *_: (0, t)))
    else:
        out_shape = anchors_shape
        out_specs = anchors_spec

    # Scoped-VMEM request from the block footprint (v5e default is only 16 MiB).
    anchors_block_bytes = n_rows * lane_w * 4 * 2                     # double buffered
    vis_block_bytes = (_round_up(num_images * A, 32) * tile * 2) if emit_vis else 0
    footprint = anchors_block_bytes + vis_block_bytes + 8 * lane_w * num_levels
    vmem_limit = int(min(48 * 2 ** 20, max(32 * 2 ** 20, 4 * footprint)))

    anchors_bytes = padded_total * four_a * 4
    vis_bytes = num_images * A * padded_total if emit_vis else 0
    cost = pl.CostEstimate(
        flops=padded_total * (6 * four_a
                              + (A * (2 + 4 * num_images) if emit_vis else 0)),
        transcendentals=0,
        bytes_accessed=anchors_bytes + vis_bytes + num_images * 8 + num_tiles * 16)

    grid_spec = pltpu.PrefetchScalarGridSpec(
        num_scalar_prefetch=5, grid=(num_tiles,),
        in_specs=in_specs, out_specs=out_specs)
    cparams = pltpu.CompilerParams(dimension_semantics=("parallel",),
                                   vmem_limit_bytes=vmem_limit)

    def run(img_hw, base_il, base_cm):
        args = [img_hw.astype(jnp.int32), lvl_a, str_a, w_a, off_a, base_il]
        if emit_vis:
            args.append(base_cm)
        res = pl.pallas_call(kernel, out_shape=out_shape, grid_spec=grid_spec,
                             compiler_params=cparams, cost_estimate=cost)(*args)
        if emit_vis:
            slab, vis_slab = res
        else:
            slab = res
        flat = slab.reshape(-1)                # row-major == PyTorch element order
        outs = []
        for hw, start in zip(hws, level_starts):
            s0 = start * four_a
            bbox = flat[s0:s0 + hw * four_a].reshape(hw * A, 4)
            if emit_vis:
                v = vis_slab[:, start:start + hw].reshape(num_images, A, hw)
                v = jnp.transpose(v, (0, 2, 1)).reshape(num_images, hw * A)
                v = v.astype(jnp.uint8)
            else:
                v = jnp.ones((num_images, hw * A), dtype=jnp.uint8)
            outs.append((bbox, v))
        return tuple(outs)

    return jax.jit(run)


# ----------------------------------------------------------------------------
# AnchorGenerator in JAX (Pallas-backed forward).
# ----------------------------------------------------------------------------
class AnchorGenerator:
    def __init__(self, sizes=(128, 256, 512), aspect_ratios=(0.5, 1.0, 2.0),
                 anchor_strides=(8, 16, 32), straddle_thresh=0):
        if len(anchor_strides) == 1:
            anchor_stride = anchor_strides[0]
            cell_anchors = [generate_anchors(anchor_stride, sizes, aspect_ratios)]
        else:
            if len(anchor_strides) != len(sizes):
                raise RuntimeError("FPN should have #anchor_strides == #sizes")
            cell_anchors = [
                generate_anchors(
                    stride,
                    size if isinstance(size, (tuple, list)) else (size,),
                    aspect_ratios)
                for stride, size in zip(anchor_strides, sizes)]
        self.strides = anchor_strides
        self.cell_anchors = [np.asarray(a, dtype=np.float32) for a in cell_anchors]
        self.straddle_thresh = straddle_thresh

        a_counts = {int(a.shape[0]) for a in self.cell_anchors}
        if len(a_counts) != 1:
            # TODO(synk): support per-level anchor counts (pad to max A) in the fused kernel.
            raise NotImplementedError("fused kernel expects the same #anchors per level")
        self._A = int(self.cell_anchors[0].shape[0])
        four_a = 4 * self._A
        k_pos = 128 // math.gcd(four_a, 128)
        # Interleaved cell-anchor row per level: lane l holds cell[(l % 4A)//4, l % 4].
        base_il = np.stack([np.tile(a.reshape(-1), k_pos)[None, :]
                            for a in self.cell_anchors], axis=0)
        # Coord-major per level (row c*A + a), used by the visibility predicates.
        base_cm = np.stack([a.T.reshape(four_a, 1) for a in self.cell_anchors], axis=0)
        self._base_il = jnp.asarray(base_il, dtype=jnp.float32)
        self._base_cm = jnp.asarray(base_cm, dtype=jnp.float32)
        self._fn_cache = {}

    def num_anchors_per_location(self):
        return [int(a.shape[0]) for a in self.cell_anchors]

    def _get_fn(self, grid_sizes, num_images):
        key = (grid_sizes, num_images)
        fn = self._fn_cache.get(key)
        if fn is None:
            fn = _build_fused_fn(grid_sizes, self.strides, self._A, num_images,
                                 self.straddle_thresh)
            self._fn_cache[key] = fn
        return fn

    def __call__(self, image_sizes, feature_maps):
        # image_sizes: list of (image_height, image_width), or an ImageList-like
        # object with an .image_sizes attribute.
        # feature_maps: list of NCHW arrays (only H, W are consumed).
        if hasattr(image_sizes, "image_sizes"):
            image_sizes = image_sizes.image_sizes
        grid_sizes = tuple((int(fm.shape[-2]), int(fm.shape[-1]))
                           for fm in feature_maps)
        num_images = len(image_sizes)
        img_hw = jnp.asarray(np.asarray([(int(h), int(w)) for (h, w) in image_sizes],
                                        dtype=np.int32))
        per_level = self._get_fn(grid_sizes, num_images)(
            img_hw, self._base_il, self._base_cm)

        anchors = []
        for img_idx, (image_height, image_width) in enumerate(image_sizes):
            anchors_in_image = []
            for (bbox, vis) in per_level:
                # BoxList stand-in: dict with bbox / size / mode / visibility.
                anchors_in_image.append({
                    "bbox": bbox,                             # (HW*A, 4) float32, xyxy
                    "size": (int(image_width), int(image_height)),
                    "mode": "xyxy",
                    "visibility": vis[img_idx],               # (HW*A,) uint8 0/1
                })
            anchors.append(anchors_in_image)
        return anchors


# ----------------------------------------------------------------------------
# Pure-numpy reference of the forward pass for correctness checking.
# ----------------------------------------------------------------------------
def _reference(grid_sizes, strides, cell_anchors, image_sizes, straddle_thresh):
    per_level_anchors = []
    for (gh, gw), stride, base in zip(grid_sizes, strides, cell_anchors):
        sx = np.arange(0, gw * stride, step=stride, dtype=np.float32)
        sy = np.arange(0, gh * stride, step=stride, dtype=np.float32)
        shift_y, shift_x = np.meshgrid(sy, sx, indexing="ij")
        shift_x = shift_x.reshape(-1)
        shift_y = shift_y.reshape(-1)
        shifts = np.stack((shift_x, shift_y, shift_x, shift_y), axis=1)
        base = np.asarray(base, dtype=np.float32)
        per_level_anchors.append(
            (shifts[:, None, :] + base[None, :, :]).reshape(-1, 4))
    out = []
    for (h, w) in image_sizes:
        per_img = []
        for a in per_level_anchors:
            if straddle_thresh >= 0:
                vis = ((a[:, 0] >= -straddle_thresh) &
                       (a[:, 1] >= -straddle_thresh) &
                       (a[:, 2] < w + straddle_thresh) &
                       (a[:, 3] < h + straddle_thresh))
            else:
                vis = np.ones(a.shape[0], dtype=bool)
            per_img.append((a, vis.astype(np.uint8)))
        out.append(per_img)
    return out


if __name__ == "__main__":
    key = jax.random.PRNGKey(0)
    k1, k2, k3 = jax.random.split(key, 3)

    # Small FPN-like setup: batch=2, channels=4, 3 pyramid levels.
    feature_maps = [
        jax.random.normal(k1, (2, 4, 16, 16), dtype=jnp.float32),  # stride 8
        jax.random.normal(k2, (2, 4, 8, 8), dtype=jnp.float32),    # stride 16
        jax.random.normal(k3, (2, 4, 4, 4), dtype=jnp.float32),    # stride 32
    ]
    image_sizes = [(120, 128), (128, 112)]  # (height, width) per image

    gen = AnchorGenerator(sizes=(128, 256, 512),
                          aspect_ratios=(0.5, 1.0, 2.0),
                          anchor_strides=(8, 16, 32),
                          straddle_thresh=0)

    result = gen(image_sizes, feature_maps)

    # Block on all device outputs.
    for per_img in result:
        for box in per_img:
            jax.block_until_ready(box["bbox"])
            jax.block_until_ready(box["visibility"])

    # Verify against the pure-numpy reference of the PyTorch semantics.
    grid_sizes = [fm.shape[-2:] for fm in feature_maps]
    ref = _reference(grid_sizes, gen.strides,
                     [np.asarray(a) for a in gen.cell_anchors],
                     image_sizes, gen.straddle_thresh)
    for img_idx, per_img in enumerate(result):
        for lvl, box in enumerate(per_img):
            ref_a, ref_v = ref[img_idx][lvl]
            np.testing.assert_allclose(np.asarray(box["bbox"]), ref_a,
                                       rtol=0, atol=1e-4)
            np.testing.assert_array_equal(np.asarray(box["visibility"]), ref_v)

    print("KERNEL_OK")
</pallas_src>

<mosaic_0001>
module attributes {stable_mosaic.version = 11 : i64} {
  func.func @_fused_anchor_kernel(%arg0: i32, %arg1: memref<2x2xi32, #tpu.memory_space<smem>>, %arg2: memref<3xi32, #tpu.memory_space<smem>>, %arg3: memref<3xi32, #tpu.memory_space<smem>>, %arg4: memref<3xi32, #tpu.memory_space<smem>>, %arg5: memref<3xi32, #tpu.memory_space<smem>>, %arg6: memref<1x1x384xf32, #tpu.memory_space<vmem>>, %arg7: memref<1x12x1xf32, #tpu.memory_space<vmem>>, %arg8: memref<8x384xf32, #tpu.memory_space<vmem>>, %arg9: memref<6x256xi8, #tpu.memory_space<vmem>>) attributes {dimension_semantics = [#tpu.dimension_semantics<parallel>], iteration_bounds = array<i64: 3>, scalar_prefetch = 5 : i64, scratch_operands = 0 : i64, tpu.core_type = #tpu.core_type<tc>, window_params = [{transform_indices = @transform_0, window_bounds = array<i64: 1, 1, 384>}, {transform_indices = @transform_1, window_bounds = array<i64: 1, 12, 1>}, {transform_indices = @transform_2, window_bounds = array<i64: 8, 384>}, {transform_indices = @transform_3, window_bounds = array<i64: 6, 256>}]} {
    %0 = arith.index_cast %arg0 : i32 to index
    %1 = memref.load %arg3[%0] : memref<3xi32, #tpu.memory_space<smem>>
    %2 = arith.sitofp %1 : i32 to f32
    %3 = arith.index_cast %arg0 : i32 to index
    %4 = memref.load %arg4[%3] : memref<3xi32, #tpu.memory_space<smem>>
    %5 = arith.sitofp %4 : i32 to f32
    %6 = arith.index_cast %arg0 : i32 to index
    %7 = memref.load %arg5[%6] : memref<3xi32, #tpu.memory_space<smem>>
    %8 = tpu.iota {dimensions = array<i32: 1>} : vector<1x384xi32>
    %9 = arith.sitofp %8 : vector<1x384xi32> to vector<1x384xf32>
    %cst = arith.constant 5.000000e-01 : f32
    %10 = vector.broadcast %cst : f32 to vector<1x384xf32>
    %11 = arith.addf %9, %10 : vector<1x384xf32>
    %cst_0 = arith.constant 0.0833333358 : f32
    %12 = vector.broadcast %cst_0 : f32 to vector<1x384xf32>
    %13 = arith.mulf %11, %12 : vector<1x384xf32>
    %14 = math.floor %13 : vector<1x384xf32>
    %cst_1 = arith.constant 1.200000e+01 : f32
    %15 = vector.broadcast %cst_1 : f32 to vector<1x384xf32>
    %16 = arith.mulf %14, %15 : vector<1x384xf32>
    %17 = arith.subf %9, %16 : vector<1x384xf32>
    %cst_2 = arith.constant 5.000000e-01 : f32
    %18 = vector.broadcast %cst_2 : f32 to vector<1x384xf32>
    %19 = arith.addf %17, %18 : vector<1x384xf32>
    %cst_3 = arith.constant 2.500000e-01 : f32
    %20 = vector.broadcast %cst_3 : f32 to vector<1x384xf32>
    %21 = arith.mulf %19, %20 : vector<1x384xf32>
    %22 = math.floor %21 : vector<1x384xf32>
    %cst_4 = arith.constant 4.000000e+00 : f32
    %23 = vector.broadcast %cst_4 : f32 to vector<1x384xf32>
    %24 = arith.mulf %22, %23 : vector<1x384xf32>
    %25 = arith.subf %17, %24 : vector<1x384xf32>
    %cst_5 = arith.constant 0.000000e+00 : f32
    %26 = vector.broadcast %cst_5 : f32 to vector<1x384xf32>
    %27 = arith.cmpf oeq, %25, %26 : vector<1x384xf32>
    %cst_6 = arith.constant 2.000000e+00 : f32
    %28 = vector.broadcast %cst_6 : f32 to vector<1x384xf32>
    %29 = arith.cmpf oeq, %25, %28 : vector<1x384xf32>
    %30 = arith.ori %27, %29 : vector<1x384xi1>
    %31 = arith.extui %30 : vector<1x384xi1> to vector<1x384xi32>
    %32 = arith.sitofp %31 : vector<1x384xi32> to vector<1x384xf32>
    %cst_7 = arith.constant 1.000000e+00 : f32
    %33 = vector.broadcast %cst_7 : f32 to vector<1x384xf32>
    %34 = arith.subf %33, %32 : vector<1x384xf32>
    %35 = tpu.iota {dimensions = array<i32: 0>} : vector<8x1xi32>
    %c32_i32 = arith.constant 32 : i32
    %36 = vector.broadcast %c32_i32 : i32 to vector<8x1xi32>
    %37 = arith.muli %35, %36 : vector<8x1xi32>
    %38 = vector.broadcast %7 : i32 to vector<8x1xi32>
    %39 = arith.addi %38, %37 : vector<8x1xi32>
    %40 = arith.sitofp %39 : vector<8x1xi32> to vector<8x1xf32>
    %41 = vector.broadcast %40 : vector<8x1xf32> to vector<8x384xf32>
    %42 = vector.broadcast %14 : vector<1x384xf32> to vector<8x384xf32>
    %43 = arith.addf %41, %42 : vector<8x384xf32>
    %cst_8 = arith.constant 5.000000e-01 : f32
    %44 = vector.broadcast %cst_8 : f32 to vector<8x384xf32>
    %45 = arith.addf %43, %44 : vector<8x384xf32>
    %46 = vector.broadcast %5 : f32 to vector<8x384xf32>
    %47 = arith.divf %45, %46 : vector<8x384xf32>
    %48 = math.floor %47 : vector<8x384xf32>
    %49 = vector.broadcast %5 : f32 to vector<8x384xf32>
    %50 = arith.mulf %48, %49 : vector<8x384xf32>
    %51 = arith.subf %43, %50 : vector<8x384xf32>
    %52 = vector.broadcast %32 : vector<1x384xf32> to vector<8x384xf32>
    %53 = arith.mulf %51, %52 : vector<8x384xf32>
    %54 = vector.broadcast %34 : vector<1x384xf32> to vector<8x384xf32>
    %55 = arith.mulf %48, %54 : vector<8x384xf32>
    %56 = arith.addf %53, %55 : vector<8x384xf32>
    %57 = vector.broadcast %2 : f32 to vector<8x384xf32>
    %58 = arith.mulf %56, %57 : vector<8x384xf32>
    %c0 = arith.constant 0 : index
    %c0_9 = arith.constant 0 : index
    %c0_10 = arith.constant 0 : index
    %59 = vector.load %arg6[%c0, %c0_9, %c0_10] : memref<1x1x384xf32, #tpu.memory_space<vmem>>, vector<1x1x384xf32>
    %60 = vector.shape_cast %59 : vector<1x1x384xf32> to vector<1x384xf32>
    %61 = vector.broadcast %60 : vector<1x384xf32> to vector<8x384xf32>
    %62 = arith.addf %61, %58 : vector<8x384xf32>
    %c0_11 = arith.constant 0 : index
    %c0_12 = arith.constant 0 : index
    %63 = vector.load %arg8[%c0_11, %c0_12] : memref<8x384xf32, #tpu.memory_space<vmem>>, vector<8x384xf32>
    tpu.vector_store %arg8[%c0_11, %c0_12], %62 {strides = array<i32>} : memref<8x384xf32, #tpu.memory_space<vmem>>, vector<8x384xf32>,
    %64 = tpu.iota {dimensions = array<i32: 1>} : vector<1x256xi32>
    %65 = vector.broadcast %7 : i32 to vector<1x256xi32>
    %66 = arith.addi %65, %64 : vector<1x256xi32>
    %67 = arith.sitofp %66 : vector<1x256xi32> to vector<1x256xf32>
    %cst_13 = arith.constant 5.000000e-01 : f32
    %68 = vector.broadcast %cst_13 : f32 to vector<1x256xf32>
    %69 = arith.addf %67, %68 : vector<1x256xf32>
    %70 = vector.broadcast %5 : f32 to vector<1x256xf32>
    %71 = arith.divf %69, %70 : vector<1x256xf32>
    %72 = math.floor %71 : vector<1x256xf32>
    %73 = vector.broadcast %5 : f32 to vector<1x256xf32>
    %74 = arith.mulf %72, %73 : vector<1x256xf32>
    %75 = arith.subf %67, %74 : vector<1x256xf32>
    %76 = vector.broadcast %2 : f32 to vector<1x256xf32>
    %77 = arith.mulf %75, %76 : vector<1x256xf32>
    %78 = vector.broadcast %2 : f32 to vector<1x256xf32>
    %79 = arith.mulf %72, %78 : vector<1x256xf32>
    %c0_14 = arith.constant 0 : index
    %c0_15 = arith.constant 0 : index
    %c0_16 = arith.constant 0 : index
    %80 = vector.load %arg7[%c0_14, %c0_15, %c0_16] : memref<1x12x1xf32, #tpu.memory_space<vmem>>, vector<1x12x1xf32>
    %81 = vector.shape_cast %80 : vector<1x12x1xf32> to vector<12x1xf32>
    %82 = vector.extract_strided_slice %81 {offsets = [0, 0], sizes = [3, 1], strides = [1, 1]} : vector<12x1xf32> to vector<3x1xf32>
    %83 = vector.broadcast %82 : vector<3x1xf32> to vector<3x256xf32>
    %84 = vector.broadcast %77 : vector<1x256xf32> to vector<3x256xf32>
    %85 = arith.addf %83, %84 : vector<3x256xf32>
    %86 = vector.extract_strided_slice %81 {offsets = [3, 0], sizes = [3, 1], strides = [1, 1]} : vector<12x1xf32> to vector<3x1xf32>
    %87 = vector.broadcast %86 : vector<3x1xf32> to vector<3x256xf32>
    %88 = vector.broadcast %79 : vector<1x256xf32> to vector<3x256xf32>
    %89 = arith.addf %87, %88 : vector<3x256xf32>
    %90 = vector.extract_strided_slice %81 {offsets = [6, 0], sizes = [3, 1], strides = [1, 1]} : vector<12x1xf32> to vector<3x1xf32>
    %91 = vector.broadcast %90 : vector<3x1xf32> to vector<3x256xf32>
    %92 = vector.broadcast %77 : vector<1x256xf32> to vector<3x256xf32>
    %93 = arith.addf %91, %92 : vector<3x256xf32>
    %94 = vector.extract_strided_slice %81 {offsets = [9, 0], sizes = [3, 1], strides = [1, 1]} : vector<12x1xf32> to vector<3x1xf32>
    %95 = vector.broadcast %94 : vector<3x1xf32> to vector<3x256xf32>
    %96 = vector.broadcast %79 : vector<1x256xf32> to vector<3x256xf32>
    %97 = arith.addf %95, %96 : vector<3x256xf32>
    %cst_17 = arith.constant 0.000000e+00 : f32
    %cst_18 = arith.constant 0.000000e+00 : f32
    %98 = arith.subf %cst_17, %cst_18 : f32
    %99 = vector.broadcast %98 : f32 to vector<3x256xf32>
    %100 = arith.cmpf oge, %85, %99 : vector<3x256xf32>
    %cst_19 = arith.constant 0.000000e+00 : f32
    %cst_20 = arith.constant 0.000000e+00 : f32
    %101 = arith.subf %cst_19, %cst_20 : f32
    %102 = vector.broadcast %101 : f32 to vector<3x256xf32>
    %103 = arith.cmpf oge, %89, %102 : vector<3x256xf32>
    %104 = arith.andi %100, %103 : vector<3x256xi1>
    %c0_21 = arith.constant 0 : index
    %c0_22 = arith.constant 0 : index
    %105 = memref.load %arg1[%c0_21, %c0_22] : memref<2x2xi32, #tpu.memory_space<smem>>
    %106 = arith.sitofp %105 : i32 to f32
    %c0_23 = arith.constant 0 : index
    %c1 = arith.constant 1 : index
    %107 = memref.load %arg1[%c0_23, %c1] : memref<2x2xi32, #tpu.memory_space<smem>>
    %108 = arith.sitofp %107 : i32 to f32
    %cst_24 = arith.constant 0.000000e+00 : f32
    %109 = arith.addf %108, %cst_24 : f32
    %110 = vector.broadcast %109 : f32 to vector<3x256xf32>
    %111 = arith.cmpf olt, %93, %110 : vector<3x256xf32>
    %112 = arith.andi %104, %111 : vector<3x256xi1>
    %cst_25 = arith.constant 0.000000e+00 : f32
    %113 = arith.addf %106, %cst_25 : f32
    %114 = vector.broadcast %113 : f32 to vector<3x256xf32>
    %115 = arith.cmpf olt, %97, %114 : vector<3x256xf32>
    %116 = arith.andi %112, %115 : vector<3x256xi1>
    %117 = arith.extui %116 : vector<3x256xi1> to vector<3x256xi8>
    %c1_26 = arith.constant 1 : index
    %c0_27 = arith.constant 0 : index
    %118 = memref.load %arg1[%c1_26, %c0_27] : memref<2x2xi32, #tpu.memory_space<smem>>
    %119 = arith.sitofp %118 : i32 to f32
    %c1_28 = arith.constant 1 : index
    %c1_29 = arith.constant 1 : index
    %120 = memref.load %arg1[%c1_28, %c1_29] : memref<2x2xi32, #tpu.memory_space<smem>>
    %121 = arith.sitofp %120 : i32 to f32
    %cst_30 = arith.constant 0.000000e+00 : f32
    %122 = arith.addf %121, %cst_30 : f32
    %123 = vector.broadcast %122 : f32 to vector<3x256xf32>
    %124 = arith.cmpf olt, %93, %123 : vector<3x256xf32>
    %125 = arith.andi %104, %124 : vector<3x256xi1>
    %cst_31 = arith.constant 0.000000e+00 : f32
    %126 = arith.addf %119, %cst_31 : f32
    %127 = vector.broadcast %126 : f32 to vector<3x256xf32>
    %128 = arith.cmpf olt, %97, %127 : vector<3x256xf32>
    %129 = arith.andi %125, %128 : vector<3x256xi1>
    %130 = arith.extui %129 : vector<3x256xi1> to vector<3x256xi8>
    %131 = tpu.concatenate %117, %130 in 0 : vector<3x256xi8>, vector<3x256xi8> -> vector<6x256xi8>
    %c0_32 = arith.constant 0 : index
    %c0_33 = arith.constant 0 : index
    %132 = vector.load %arg9[%c0_32, %c0_33] : memref<6x256xi8, #tpu.memory_space<vmem>>, vector<6x256xi8>
    tpu.vector_store %arg9[%c0_32, %c0_33], %131 {strides = array<i32>} : memref<6x256xi8, #tpu.memory_space<vmem>>, vector<6x256xi8>,
    return
  }
  func.func @transform_0(%arg0: i32, %arg1: memref<2x2xi32, #tpu.memory_space<smem>>, %arg2: memref<3xi32, #tpu.memory_space<smem>>, %arg3: memref<3xi32, #tpu.memory_space<smem>>, %arg4: memref<3xi32, #tpu.memory_space<smem>>, %arg5: memref<3xi32, #tpu.memory_space<smem>>) -> (i32, i32, i32) {
    %0 = arith.index_cast %arg0 : i32 to index
    %1 = memref.load %arg2[%0] : memref<3xi32, #tpu.memory_space<smem>>
    %c0_i32 = arith.constant 0 : i32
    %c0_i32_0 = arith.constant 0 : i32
    %c0_i32_1 = arith.constant 0 : i32
    return %1, %c0_i32, %c0_i32_0 : i32, i32, i32
  }
  func.func @transform_1(%arg0: i32, %arg1: memref<2x2xi32, #tpu.memory_space<smem>>, %arg2: memref<3xi32, #tpu.memory_space<smem>>, %arg3: memref<3xi32, #tpu.memory_space<smem>>, %arg4: memref<3xi32, #tpu.memory_space<smem>>, %arg5: memref<3xi32, #tpu.memory_space<smem>>) -> (i32, i32, i32) {
    %0 = arith.index_cast %arg0 : i32 to index
    %1 = memref.load %arg2[%0] : memref<3xi32, #tpu.memory_space<smem>>
    %c0_i32 = arith.constant 0 : i32
    %c0_i32_0 = arith.constant 0 : i32
    %c0_i32_1 = arith.constant 0 : i32
    return %1, %c0_i32, %c0_i32_0 : i32, i32, i32
  }
  func.func @transform_2(%arg0: i32, %arg1: memref<2x2xi32, #tpu.memory_space<smem>>, %arg2: memref<3xi32, #tpu.memory_space<smem>>, %arg3: memref<3xi32, #tpu.memory_space<smem>>, %arg4: memref<3xi32, #tpu.memory_space<smem>>, %arg5: memref<3xi32, #tpu.memory_space<smem>>) -> (i32, i32) {
    %c0_i32 = arith.constant 0 : i32
    %c0_i32_0 = arith.constant 0 : i32
    return %arg0, %c0_i32 : i32, i32
  }
  func.func @transform_3(%arg0: i32, %arg1: memref<2x2xi32, #tpu.memory_space<smem>>, %arg2: memref<3xi32, #tpu.memory_space<smem>>, %arg3: memref<3xi32, #tpu.memory_space<smem>>, %arg4: memref<3xi32, #tpu.memory_space<smem>>, %arg5: memref<3xi32, #tpu.memory_space<smem>>) -> (i32, i32) {
    %c0_i32 = arith.constant 0 : i32
    %c0_i32_0 = arith.constant 0 : i32
    return %c0_i32, %arg0 : i32, i32
  }
}

</mosaic_0001>

<llo_original>
// kernel: run.1
$region0: #{run.1}
  #allocation0 [shape = 'u32[]', space=smem, size = 0x4, offset = 0x4, fixed_abs, tag = 'smem constant byte address 0x4 - core index']
  #allocation1 [shape = 'u32[72,128]{1,0:T(1,128)}', space=vmem, size = 0x9000, scoped, tag = 'internal scratch']
  #allocation2 [shape = 's32[1]{0}', space=sflag, size = 0x4, scoped, tag = 'scoped memory for run.1']
  #allocation3 [shape = 'u8[1024]{0}', space=smem, size = 0x400, scoped, tag = 'prefetched SMEM operand 0']
  #allocation4 [shape = 'u8[512]{0}', space=smem, size = 0x200, scoped, tag = 'prefetched SMEM operand 1']
  #allocation5 [shape = 'u8[512]{0}', space=smem, size = 0x200, scoped, tag = 'prefetched SMEM operand 2']
  #allocation6 [shape = 'u8[512]{0}', space=smem, size = 0x200, scoped, tag = 'prefetched SMEM operand 3']
  #allocation7 [shape = 'u8[512]{0}', space=smem, size = 0x200, scoped, tag = 'prefetched SMEM operand 4']
  %s0 = inlined_call_operand.hbm [shape: s32[2,2], index: 0, kind: input, shape index: {}]
  %s1 = inlined_call_operand.vmem [shape: s32[3], index: 1, kind: input, shape index: {}]
  %s2 = inlined_call_operand.hbm [shape: s32[3], index: 2, kind: input, shape index: {}]
  %s3 = inlined_call_operand.hbm [shape: s32[3], index: 3, kind: input, shape index: {}]
  %s4 = inlined_call_operand.vmem [shape: s32[3], index: 4, kind: input, shape index: {}]
  %s5 = inlined_call_operand.hbm [shape: f32[3,1,384], index: 5, kind: input, shape index: {}]
  %s6 = inlined_call_operand.vmem [shape: f32[3,12,1], index: 6, kind: input, shape index: {}]
  %s7 = inlined_call_operand.vmem [shape: f32[24,384], index: 7, kind: output, shape index: {0}]
  %s8 = inlined_call_operand.vmem [shape: s8[6,768], index: 8, kind: output, shape index: {1}]
  %9 = xla_tuple %s7, %s8
  %s10 = sld [smem:[#allocation0]]
  $region53: #{run.1} parent=0
    _
  %s12 = ssub.s32 1, %s10
  %s13 = scalar_select 0, %s12, %s10
  %s15 = sshll.u32 %s0, 4
  %s16 = int_to_ptr.hbm [resolvable:$true] %s15
  %18 = dma.hbm_to_smem %s16, 32, [#allocation3], [#allocation2]
  %s20 = sshll.u32 %s1, 4
  %s21 = int_to_ptr.vmem [resolvable:$true] %s20
  %23 = dma.vmem_to_smem %s21, 16, [#allocation4], [#allocation2]
  %s25 = sshll.u32 %s2, 4
  %s26 = int_to_ptr.hbm [resolvable:$true] %s25
  %28 = dma.hbm_to_smem %s26, 16, [#allocation5], [#allocation2]
  %s30 = sshll.u32 %s3, 4
  %s31 = int_to_ptr.hbm [resolvable:$true] %s30
  %33 = dma.hbm_to_smem %s31, 16, [#allocation6], [#allocation2]
  %s35 = sshll.u32 %s4, 4
  %s36 = int_to_ptr.vmem [resolvable:$true] %s35
  %38 = dma.vmem_to_smem %s36, 16, [#allocation7], [#allocation2]
  %40 = dma.done [#allocation2], 96
  %41 = sfence
  $region1: #{run.1} parent=0
    #allocation8 [shape = 'u8[3072]{0}', space=vmem, size = 0xc00, scoped, tag = 'input window, operand 5']
    #allocation9 [shape = 's32[2]{0}', space=sflag, size = 0x8, scoped, tag = 'scoped memory for run.1']
    %42 = vsyncpa [#allocation9], 0
    %s43 = scalar_lea.sflag [#allocation9], 1
    %44 = vsyncpa %s43, 0
    loop: start=0, step=1, limit=5
    $region2: #{run.1} parent=1 // loop_pre_header
      _
    $region3: #{run.1} parent=1 // loop_header
      %s46 = sphi 0, %s50
      %p47 = scmp.ge.s32.totalorder %s46, 5
      %s58 = sphi 0, %s60
      %s61 = sphi 0, %s58
      %s62 = sphi 0, %s61
      %s78 = sphi 0, %s62
      %s86 = sphi 0, %s88
      %s89 = sphi 0, %s86
      %s90 = sphi 0, %s89
      %s106 = sphi 0, %s90
      %s112 = sphi 0, %s114
      %s115 = sphi 0, %s112
      %s116 = sphi 0, %s115
      %s132 = sphi 0, %s116
      %s138 = sphi 0, %s140
      %s141 = sphi 0, %s138
      %s142 = sphi 0, %s141
      %s158 = sphi 0, %s142
    $region4: #{run.1} parent=1 // loop_header_branch
      %49 = sbr.rel (%p47) target = $region8
    $region5: #{run.1} parent=1 // loop_body
      %s51 = ssub.s32 %s46, 1
      %s52 = ssub.s32 %s46, 2
      %s53 = sadd.s32 %s46, 1
      %s54 = sld [smem:[#allocation4 + %s46]]
      %s55 = sld [smem:[#allocation4 + %s53]]
      %s56 = ssub.s32 %s54, %s55
      %p57 = scmp.eq.s32.totalorder %s56, 0
      %s59 = sadd.s32 %s58, 1
      %s60 = scalar_select %p57, %s58, %s59
      %p63 = pneg %p57
      %p64 = scmp.eq.s32.totalorder %s46, 2
      %p65 = por %p63, %p64
      %p66 = scmp.ne.s32.totalorder %s58, %s61
      %p67 = scmp.eq.s32.totalorder %s46, 0
      %p68 = por %p66, %p67
      %p69 = scmp.ne.s32.totalorder %s58, %s61
      %p70 = scmp.eq.s32.totalorder %s51, 2
      %p71 = por %p69, %p70
      %p72 = scmp.ne.s32.totalorder %s61, %s62
      %p73 = scmp.eq.s32.totalorder %s51, 0
      %p74 = por %p72, %p73
      %p75 = scmp.ne.s32.totalorder %s61, %s62
      %p76 = scmp.eq.s32.totalorder %s52, 2
      %p77 = por %p75, %p76
      %p79 = scmp.ne.s32.totalorder %s62, %s78
      %p80 = scmp.eq.s32.totalorder %s52, 0
      %p81 = por %p79, %p80
      %s82 = sld [smem:[#allocation4 + %s46]]
      %s83 = sld [smem:[#allocation4 + %s53]]
      %s84 = ssub.s32 %s82, %s83
      %p85 = scmp.eq.s32.totalorder %s84, 0
      %s87 = sadd.s32 %s86, 1
      %s88 = scalar_select %p85, %s86, %s87
      %p91 = pneg %p85
      %p92 = scmp.eq.s32.totalorder %s46, 2
      %p93 = por %p91, %p92
      %p94 = scmp.ne.s32.totalorder %s86, %s89
      %p95 = scmp.eq.s32.totalorder %s46, 0
      %p96 = por %p94, %p95
      %p97 = scmp.ne.s32.totalorder %s86, %s89
      %p98 = scmp.eq.s32.totalorder %s51, 2
      %p99 = por %p97, %p98
      %p100 = scmp.ne.s32.totalorder %s89, %s90
      %p101 = scmp.eq.s32.totalorder %s51, 0
      %p102 = por %p100, %p101
      %p103 = scmp.ne.s32.totalorder %s89, %s90
      %p104 = scmp.eq.s32.totalorder %s52, 2
      %p105 = por %p103, %p104
      %p107 = scmp.ne.s32.totalorder %s90, %s106
      %p108 = scmp.eq.s32.totalorder %s52, 0
      %p109 = por %p107, %p108
      %s110 = ssub.s32 %s46, %s53
      %p111 = scmp.eq.s32.totalorder %s110, 0
      %s113 = sadd.s32 %s112, 1
      %s114 = scalar_select %p111, %s112, %s113
      %p117 = pneg %p111
      %p118 = scmp.eq.s32.totalorder %s46, 2
      %p119 = por %p117, %p118
      %p120 = scmp.ne.s32.totalorder %s112, %s115
      %p121 = scmp.eq.s32.totalorder %s46, 0
      %p122 = por %p120, %p121
      %p123 = scmp.ne.s32.totalorder %s112, %s115
      %p124 = scmp.eq.s32.totalorder %s51, 2
      %p125 = por %p123, %p124
      %p126 = scmp.ne.s32.totalorder %s115, %s116
      %p127 = scmp.eq.s32.totalorder %s51, 0
      %p128 = por %p126, %p127
      %p129 = scmp.ne.s32.totalorder %s115, %s116
      %p130 = scmp.eq.s32.totalorder %s52, 2
      %p131 = por %p129, %p130
      %p133 = scmp.ne.s32.totalorder %s116, %s132
      %p134 = scmp.eq.s32.totalorder %s52, 0
      %p135 = por %p133, %p134
      %s136 = ssub.s32 %s46, %s53
      %p137 = scmp.eq.s32.totalorder %s136, 0
      %s139 = sadd.s32 %s138, 1
      %s140 = scalar_select %p137, %s138, %s139
      %p143 = pneg %p137
      %p144 = scmp.eq.s32.totalorder %s46, 2
      %p145 = por %p143, %p144
      %p146 = scmp.ne.s32.totalorder %s138, %s141
      %p147 = scmp.eq.s32.totalorder %s46, 0
      %p148 = por %p146, %p147
      %p149 = scmp.ne.s32.totalorder %s138, %s141
      %p150 = scmp.eq.s32.totalorder %s51, 2
      %p151 = por %p149, %p150
      %p152 = scmp.ne.s32.totalorder %s141, %s142
      %p153 = scmp.eq.s32.totalorder %s51, 0
      %p154 = por %p152, %p153
      %p155 = scmp.ne.s32.totalorder %s141, %s142
      %p156 = scmp.eq.s32.totalorder %s52, 2
      %p157 = por %p155, %p156
      %p159 = scmp.ne.s32.totalorder %s142, %s158
      %p160 = scmp.eq.s32.totalorder %s52, 0
      %p161 = por %p159, %p160
      %p162 = scmp.le.s32.totalorder 1, %s46
      %p163 = scmp.lt.s32.totalorder %s46, 4
      %p164 = pnand %p162, %p163
      %p165 = pneg %p164
      // Predicated region
      $region9: #{run.1} parent=5 // pred_check
        _
      $region10: #{run.1} parent=5 // pred_check_branch
        %167 = sbr.rel (%p164) target = $region12
      $region11: #{run.1} parent=5 // pred_region
        %s168 = ssub.s32 %s46, 1
      $region12: #{run.1} parent=5 // pred_fallthru
        _
      %p169 = scmp.lt.s32.totalorder %s46, 3
      // Predicated region
      $region13: #{run.1} parent=5 // pred_check
        %p170 = pneg %p169
      $region14: #{run.1} parent=5 // pred_check_branch
        %172 = sbr.rel (%p170) target = $region16
      $region15: #{run.1} parent=5 // pred_region
        // Predicated region
        $region17: #{run.1} parent=15 // pred_check
          %p173 = pneg %p68
        $region18: #{run.1} parent=15 // pred_check_branch
          %175 = sbr.rel (%p173) target = $region20
        $region19: #{run.1} parent=15 // pred_region
          %s176 = sand.u32 %s58, 1
          %s177 = scalar_lea.sflag [#allocation9], %s176
          %s178 = sand.u32 %s58, 1
          %s179 = smul.addr %s178, 3
          %s180 = scalar_lea.vmem [#allocation8], %s179
          %s181 = sld [smem:[#allocation4 + %s46]]
          %183 = vsyncadd %s177, 0
          %s184 = smul.addr %s181, 3
          %s185 = scalar_lea.hbm %s5, %s184
          %s187 = sshll.u32 %s185, 4
          %s188 = int_to_ptr.hbm [resolvable:$true] %s187
          %s189 = sshll.u32 %s180, 4
          %s190 = int_to_ptr.vmem [resolvable:$true] %s189
          %192 = dma.hbm_to_vmem [thread:$0]  %s188, 48, %s190, %s177
        $region20: #{run.1} parent=15 // pred_fallthru
          _
        // Predicated region
        $region21: #{run.1} parent=15 // pred_check
          %p193 = pneg %p96
        $region22: #{run.1} parent=15 // pred_check_branch
          %195 = sbr.rel (%p193) target = $region24
        $region23: #{run.1} parent=15 // pred_region
          %s196 = sld [smem:[#allocation4 + %s46]]
          %p197 = scmp.lt.s32.totalorder %s196, 2
          %s198 = scalar_select %p197, %s196, 2
          %s199 = smul.addr %s198, 2
          %s200 = smul.addr %s199, 8
          %s201 = scalar_lea.vmem %s6, %s200
          %s202 = sld [smem:[#allocation4 + %s46]]
        $region24: #{run.1} parent=15 // pred_fallthru
          _
      $region16: #{run.1} parent=5 // pred_fallthru
        _
      %p203 = scmp.le.s32.totalorder 1, %s46
      %p204 = scmp.lt.s32.totalorder %s46, 4
      %p205 = pnand %p203, %p204
      %p206 = pneg %p205
      // Predicated region
      $region25: #{run.1} parent=5 // pred_check
        _
      $region26: #{run.1} parent=5 // pred_check_branch
        %208 = sbr.rel (%p205) target = $region28
      $region27: #{run.1} parent=5 // pred_region
        %s209 = ssub.s32 %s46, 1
        %s210 = sand.u32 %s61, 1
        %s211 = scalar_lea.sflag [#allocation9], %s210
        %s212 = sand.u32 %s61, 1
        %s213 = smul.addr %s212, 3
        %s214 = scalar_lea.vmem [#allocation8], %s213
        // Predicated region
        $region29: #{run.1} parent=27 // pred_check
          %p215 = pneg %p74
        $region30: #{run.1} parent=27 // pred_check_branch
          %217 = sbr.rel (%p215) target = $region32
        $region31: #{run.1} parent=27 // pred_region
          %219 = dma.done %s211, 48
        $region32: #{run.1} parent=27 // pred_fallthru
          _
        %s220 = sand.u32 %s61, 1
        %s221 = scalar_lea.sflag [#allocation9], %s220
        %s222 = sand.u32 %s61, 1
        %s223 = smul.addr %s222, 3
        %s224 = scalar_lea.vmem [#allocation8], %s223
        %p225 = pneg %p74
        %p226 = pneg %p71
        %s227 = sld [smem:[#allocation4 + %s51]]
        %p228 = scmp.lt.s32.totalorder %s227, 2
        %s229 = scalar_select %p228, %s227, 2
        %s230 = smul.addr %s229, 2
        %s231 = smul.addr %s230, 8
        %s232 = scalar_lea.vmem %s6, %s231
        %p233 = pneg %p102
        %p234 = pneg %p99
        %p235 = pneg %p128
        %p236 = pneg %p125
        %p237 = scmp.lt.s32.totalorder %s51, 2
        %s238 = scalar_select %p237, %s51, 2
        %s239 = smul.addr %s238, 3
        %s240 = smul.addr %s239, 8
        %s241 = scalar_lea.vmem %s7, %s240
        %p242 = pneg %p154
        %p243 = pneg %p151
        %s244 = smul.u32 2, %s51
        %p245 = scmp.lt.s32.totalorder %s244, 5
        %s246 = scalar_select %p245, %s244, 5
        %s247 = smul.addr %s246, 2
        %s248 = scalar_lea.vmem %s8, %s247
        %s249 = sld [smem:[#allocation4 + %s51]]
        %s250 = sld [smem:[#allocation4 + %s51]]
        %p251 = scmp.lt.s32.totalorder %s250, 2
        %s252 = scalar_select %p251, %s250, 2
        %s253 = smul.addr %s252, 2
        %s254 = smul.addr %s253, 8
        %s255 = scalar_lea.vmem %s6, %s254
        %s256 = sld [smem:[#allocation4 + %s51]]
        %p257 = scmp.lt.s32.totalorder %s51, 2
        %s258 = scalar_select %p257, %s51, 2
        %s259 = smul.addr %s258, 3
        %s260 = smul.addr %s259, 8
        %s261 = scalar_lea.vmem %s7, %s260
        %s262 = smul.u32 2, %s51
        %p263 = scmp.lt.s32.totalorder %s262, 5
        %s264 = scalar_select %p263, %s262, 5
        %s265 = smul.addr %s264, 2
        %s266 = scalar_lea.vmem %s8, %s265
        %s267 = smul.u32 2, %s51
        %s270 = sld [smem:[#allocation5 + %s51]]
        %s271 = scvt.s32.f32 %s270
        %s272 = sld [smem:[#allocation6 + %s51]]
        %s273 = scvt.s32.f32 %s272
        %s274 = sld [smem:[#allocation7 + %s51]]
        %v275 = vlaneseq
        %v276 = vand.u32 %v275, 127
        %v277 = vadd.s32 %v276, 128
        %v278 = vadd.s32 %v276, 256
        %v279 = vcvt.s32.f32 %v276
        %v280 = vcvt.s32.f32 %v277
        %v281 = vcvt.s32.f32 %v278
        %v282 = vadd.f32 %v279, 0.5
        %v283 = vadd.f32 %v280, 0.5
        %v284 = vadd.f32 %v281, 0.5
        %v285 = vmul.f32 %v282, 0.083333336
        %v286 = vmul.f32 %v283, 0.083333336
        %v287 = vmul.f32 %v284, 0.083333336
        %v288 = vfloor.f32 %v285
        %v289 = vfloor.f32 %v286
        %v290 = vfloor.f32 %v287
        %v291 = vmul.f32 %v288, 12.0
        %v292 = vmul.f32 %v289, 12.0
        %v293 = vmul.f32 %v290, 12.0
        %v294 = vsub.f32 %v279, %v291
        %v295 = vsub.f32 %v280, %v292
        %v296 = vsub.f32 %v281, %v293
        %v297 = vadd.f32 %v294, 0.5
        %v298 = vadd.f32 %v295, 0.5
        %v299 = vadd.f32 %v296, 0.5
        %v300 = vmul.f32 %v297, 0.25
        %v301 = vmul.f32 %v298, 0.25
        %v302 = vmul.f32 %v299, 0.25
        %v303 = vfloor.f32 %v300
        %v304 = vfloor.f32 %v301
        %v305 = vfloor.f32 %v302
        %v306 = vmul.f32 %v303, 4.0
        %v307 = vmul.f32 %v304, 4.0
        %v308 = vmul.f32 %v305, 4.0
        %v309 = vsub.f32 %v294, %v306
        %v310 = vsub.f32 %v295, %v307
        %v311 = vsub.f32 %v296, %v308
        %vm312 = vcmp.eq.f32.partialorder %v309, 0.0
        %vm313 = vcmp.eq.f32.partialorder %v310, 0.0
        %vm314 = vcmp.eq.f32.partialorder %v311, 0.0
        %vm315 = vcmp.eq.f32.partialorder %v309, 2.0
        %vm316 = vcmp.eq.f32.partialorder %v310, 2.0
        %vm317 = vcmp.eq.f32.partialorder %v311, 2.0
        %vm318 = vmor %vm312, %vm315
        %vm319 = vmor %vm313, %vm316
        %vm320 = vmor %vm314, %vm317
        %v321 = vsel %vm318, 1, 0
        %v322 = vsel %vm319, 1, 0
        %v323 = vsel %vm320, 1, 0
        %v324 = vcvt.s32.f32 %v321
        %v325 = vcvt.s32.f32 %v322
        %v326 = vcvt.s32.f32 %v323
        %v327 = vsub.f32 1.0, %v324
        %v328 = vsub.f32 1.0, %v325
        %v329 = vsub.f32 1.0, %v326
        %v330 = vlaneseq
        %v331 = vshrl.u32 %v330, 7
        %v332 = vmul.u32 %v331, 32
        %v333 = vstv %s274
        %v334 = vadd.s32 %v333, %v332
        %v335 = vcvt.s32.f32 %v334
        %v336 = vadd.f32 %v335, %v288
        %v337 = vadd.f32 %v335, %v289
        %v338 = vadd.f32 %v335, %v290
        %v339 = vadd.f32 %v336, 0.5
        %v340 = vadd.f32 %v337, 0.5
        %v341 = vadd.f32 %v338, 0.5
        %v342 = vstv %s273
        %v343 = vrcp.pop %v342
        %v344 = vmul.f32 %v342, %v343
        %v345 = vsub.f32 1.0, %v344
        %v346 = vmul.f32 %v343, %v345
        %v347 = vadd.f32 %v343, %v346
        %vm348 = vweird.f32 %v342
        %vm349 = vweird.f32 %v343
        %vm350 = vmor %vm348, %vm349
        %v351 = vsel %vm350, %v343, %v347
        %v352 = vand.u32 2147483647, %v342
        %vm353 = vcmp.eq.f32.partialorder %v352, 8.507059e+37
        %v354 = vand.u32 %v342, 2147483648
        %v355 = vor.u32 1.1754944e-38, %v354
        %v356 = vsel %vm353, %v355, %v351
        %v357 = vmul.f32 %v339, %v356
        %v358 = vmul.f32 %v340, %v356
        %v359 = vmul.f32 %v341, %v356
        %v360 = vfloor.f32 %v357
        %v361 = vfloor.f32 %v358
        %v362 = vfloor.f32 %v359
        %v363 = vmul.f32 %v360, %v342
        %v364 = vmul.f32 %v361, %v342
        %v365 = vmul.f32 %v362, %v342
        %v366 = vsub.f32 %v336, %v363
        %v367 = vsub.f32 %v337, %v364
        %v368 = vsub.f32 %v338, %v365
        %v369 = vmul.f32 %v366, %v324
        %v370 = vmul.f32 %v367, %v325
        %v371 = vmul.f32 %v368, %v326
        %v372 = vmul.f32 %v360, %v327
        %v373 = vmul.f32 %v361, %v328
        %v374 = vmul.f32 %v362, %v329
        %v375 = vadd.f32 %v369, %v372
        %v376 = vadd.f32 %v370, %v373
        %v377 = vadd.f32 %v371, %v374
        %v378 = vstv %s271
        %v379 = vmul.f32 %v375, %v378
        %v380 = vmul.f32 %v376, %v378
        %v381 = vmul.f32 %v377, %v378
        %v382 = vld [vmem:[%s214] sm:$0x7]
        %v384 = vperm.slane %v382, 0
        %v385 = vperm.slane %v382, 1
        %v386 = vperm.slane %v382, 2
        %v390 = vadd.f32 %v384, %v379
        %v391 = vadd.f32 %v385, %v380
        %v392 = vadd.f32 %v386, %v381
        %393 = vst [vmem:[%s261] sm:$0xff] %v390
        %394 = vst [vmem:[%s261 + $0x8] sm:$0xff] %v391
        %395 = vst [vmem:[%s261 + $0x10] sm:$0xff] %v392
        %v396 = vadd.s32 %v333, %v276
        %v397 = vadd.s32 %v333, %v277
        %v398 = vcvt.s32.f32 %v396
        %v399 = vcvt.s32.f32 %v397
        %v400 = vadd.f32 %v398, 0.5
        %v401 = vadd.f32 %v399, 0.5
        %v402 = vmul.f32 %v400, %v356
        %v403 = vmul.f32 %v401, %v356
        %v404 = vfloor.f32 %v402
        %v405 = vfloor.f32 %v403
        %v406 = vmul.f32 %v404, %v342
        %v407 = vmul.f32 %v405, %v342
        %v408 = vsub.f32 %v398, %v406
        %v409 = vsub.f32 %v399, %v407
        %v410 = vmul.f32 %v408, %v378
        %v411 = vmul.f32 %v409, %v378
        %v412 = vmul.f32 %v404, %v378
        %v413 = vmul.f32 %v405, %v378
        %v414 = vld [vmem:[%s255] sm:$0xff]
        %v415 = vld [vmem:[%s255 + $0x8] sm:$0xf]
        %417 = vset.pattern.permute.xlu0 0
        %418 = vperm.xlu0 %417, %v414
        %v419 = vpop.permute.xlu0 %418
        %v421 = vadd.f32 %v419, %v410
        %v422 = vadd.f32 %v419, %v411
        %v423 = vadd.f32 %v419, %v412
        %v424 = vadd.f32 %v419, %v413
        %426 = vset.pattern.permute.xlu0 0
        %427 = vperm.xlu0 %426, %v415
        %v428 = vpop.permute.xlu0 %427
        %v430 = vadd.f32 %v428, %v410
        %v431 = vadd.f32 %v428, %v411
        %v432 = vadd.f32 %v428, %v412
        %v433 = vadd.f32 %v428, %v413
        %vm434 = vcmp.ge.f32.partialorder %v421, 0.0
        %vm435 = vcmp.ge.f32.partialorder %v422, 0.0
        %vm436 = vcmp.ge.f32.partialorder %v423, 0.0
        %vm437 = vcmp.ge.f32.partialorder %v424, 0.0
        %v438 = vsel %vm436, 1, 0
        %v439 = vsel %vm437, 1, 0
        %v440 = vrot.slane %v438, 3
        %v441 = vrot.slane %v439, 3
        %vm442 = vcmp.ne.s32.totalorder %v440, 0
        %vm443 = vcmp.ne.s32.totalorder %v441, 0
        %vm444 = vmand %vm434, %vm442
        %vm445 = vmand %vm435, %vm443
        %s446 = sld [smem:[#allocation3]]
        %s447 = scvt.s32.f32 %s446
        %s448 = sld [smem:[#allocation3 + $0x1]]
        %s449 = scvt.s32.f32 %s448
        %s450 = sadd.f32 %s449, 0.0
        %v451 = vstv %s450
        %vm452 = vcmp.lt.f32.partialorder %v421, %v451
        %vm453 = vcmp.lt.f32.partialorder %v422, %v451
        %vm454 = vcmp.lt.f32.partialorder %v430, %v451
        %vm455 = vcmp.lt.f32.partialorder %v431, %v451
        %v456 = vsel %vm452, 1, 0
        %v457 = vsel %vm453, 1, 0
        %v458 = vsel %vm454, 1, 0
        %v459 = vsel %vm455, 1, 0
        %vm460 = vcmask 1041408
        %v461 = vrot.slane %v456, 6
        %v462 = vrot.slane %v458, 6
        %v463 = vsel %vm460, %v461, %v462
        %v464 = vrot.slane %v457, 6
        %v465 = vrot.slane %v459, 6
        %v466 = vsel %vm460, %v464, %v465
        %vm467 = vcmp.ne.s32.totalorder %v463, 0
        %vm468 = vcmp.ne.s32.totalorder %v466, 0
        %vm469 = vmand %vm444, %vm467
        %vm470 = vmand %vm445, %vm468
        %s471 = sadd.f32 %s447, 0.0
        %v472 = vstv %s471
        %vm473 = vcmp.lt.f32.partialorder %v432, %v472
        %vm474 = vcmp.lt.f32.partialorder %v433, %v472
        %v475 = vsel %vm473, 1, 0
        %v476 = vsel %vm474, 1, 0
        %v477 = vrot.slane %v475, 1
        %v478 = vrot.slane %v476, 1
        %vm479 = vcmp.ne.s32.totalorder %v477, 0
        %vm480 = vcmp.ne.s32.totalorder %v478, 0
        %vm481 = vmand %vm469, %vm479
        %vm482 = vmand %vm470, %vm480
        %vm483 = vmpackc.low %vm481, %vm481
        %v484 = vsel %vm483, 16711935, 0
        %v485 = vsel %vm483, 16711935, 0
        %v486 = vpack.c.b8 %v485, %v484
        %vm487 = vnez %v486
        %vm488 = vmpackc.low %vm482, %vm482
        %v489 = vsel %vm488, 16711935, 0
        %v490 = vsel %vm488, 16711935, 0
        %v491 = vpack.c.b8 %v490, %v489
        %vm492 = vnez %v491
        %v493 = vsel %vm487, 16843009, 0
        %v494 = vsel %vm492, 16843009, 0
        %s495 = sld [smem:[#allocation3 + $0x80]]
        %s496 = scvt.s32.f32 %s495
        %s497 = sld [smem:[#allocation3 + $0x81]]
        %s498 = scvt.s32.f32 %s497
        %s499 = sadd.f32 %s498, 0.0
        %v500 = vstv %s499
        %vm501 = vcmp.lt.f32.partialorder %v421, %v500
        %vm502 = vcmp.lt.f32.partialorder %v422, %v500
        %vm503 = vcmp.lt.f32.partialorder %v430, %v500
        %vm504 = vcmp.lt.f32.partialorder %v431, %v500
        %v505 = vsel %vm501, 1, 0
        %v506 = vsel %vm502, 1, 0
        %v507 = vsel %vm503, 1, 0
        %v508 = vsel %vm504, 1, 0
        %v509 = vrot.slane %v505, 6
        %v510 = vrot.slane %v507, 6
        %v511 = vsel %vm460, %v509, %v510
        %v512 = vrot.slane %v506, 6
        %v513 = vrot.slane %v508, 6
        %v514 = vsel %vm460, %v512, %v513
        %vm515 = vcmp.ne.s32.totalorder %v511, 0
        %vm516 = vcmp.ne.s32.totalorder %v514, 0
        %vm517 = vmand %vm444, %vm515
        %vm518 = vmand %vm445, %vm516
        %s519 = sadd.f32 %s496, 0.0
        %v520 = vstv %s519
        %vm521 = vcmp.lt.f32.partialorder %v432, %v520
        %vm522 = vcmp.lt.f32.partialorder %v433, %v520
        %v523 = vsel %vm521, 1, 0
        %v524 = vsel %vm522, 1, 0
        %v525 = vrot.slane %v523, 1
        %v526 = vrot.slane %v524, 1
        %vm527 = vcmp.ne.s32.totalorder %v525, 0
        %vm528 = vcmp.ne.s32.totalorder %v526, 0
        %vm529 = vmand %vm517, %vm527
        %vm530 = vmand %vm518, %vm528
        %vm531 = vmpackc.low %vm529, %vm529
        %v532 = vsel %vm531, 16711935, 0
        %v533 = vsel %vm531, 16711935, 0
        %v534 = vpack.c.b8 %v533, %v532
        %vm535 = vnez %v534
        %vm536 = vmpackc.low %vm530, %vm530
        %v537 = vsel %vm536, 16711935, 0
        %v538 = vsel %vm536, 16711935, 0
        %v539 = vpack.c.b8 %v538, %v537
        %vm540 = vnez %v539
        %v541 = vsel %vm535, 16843009, 0
        %v542 = vsel %vm540, 16843009, 0
        %v544 = vshrl.u32 %v541, 8
        %v546 = vrot.slane %v544, 7
        %v547 = vshll.u32 %v541, 24
        %v549 = vor.u32 %v546, %v547
        %v551 = vshrl.u32 %v542, 8
        %v553 = vrot.slane %v551, 7
        %v554 = vshll.u32 %v542, 24
        %v556 = vor.u32 %v553, %v554
        %vm557 = vcmask 1040384
        %vm558 = vsmask.f32 512
        %vm559 = vmand %vm557, %vm558
        %v560 = vsel %vm559, %v493, %v549
        %v561 = vsel %vm559, %v494, %v556
        %v562 = vunpack.c.0.s8 %v560
        %v563 = vunpack.c.0.s8 %v561
        %v564 = vpack.c.b16 %v563, %v562
        %v565 = vpack.c.b8 %v564, %v564
        %vm566 = vcmask 1041408
        %vm567 = vsmask.f32 1280
        %vm568 = vmand %vm566, %vm567
        %vm569 = vcmask 1043458
        %vm570 = vsmask.f32 3328
        %vm571 = vmand %vm569, %vm570
        %vm572 = vmor %vm571, %vm568
        %v573 = vld [vmem:[%s266] sm:$0xf]
        %v574 = vsel %vm572, %v565, %v573
        %575 = vst [vmem:[%s266] sm:$0xf] %v574
        %p576 = scmp.lt.s32.totalorder %s51, 2
        %s577 = scalar_select %p576, %s51, 2
        %s578 = smul.addr %s577, 3
        %s579 = smul.addr %s578, 8
        %s580 = scalar_lea.vmem %s7, %s579
        %s581 = smul.u32 2, %s51
        %p582 = scmp.lt.s32.totalorder %s581, 5
        %s583 = scalar_select %p582, %s581, 5
        %s584 = smul.addr %s583, 2
        %s585 = scalar_lea.vmem %s8, %s584
        // Predicated region
        $region33: #{run.1} parent=27 // pred_check
          %p586 = pneg %p125
        $region34: #{run.1} parent=27 // pred_check_branch
          %588 = sbr.rel (%p586) target = $region36
        $region35: #{run.1} parent=27 // pred_region
          _
        $region36: #{run.1} parent=27 // pred_fallthru
          _
        // Predicated region
        $region37: #{run.1} parent=27 // pred_check
          %p589 = pneg %p151
        $region38: #{run.1} parent=27 // pred_check_branch
          %591 = sbr.rel (%p589) target = $region40
        $region39: #{run.1} parent=27 // pred_region
          %s592 = smul.u32 2, %s51
        $region40: #{run.1} parent=27 // pred_fallthru
          _
      $region28: #{run.1} parent=5 // pred_fallthru
        _
      %p593 = scmp.le.s32.totalorder 2, %s46
      // Predicated region
      $region41: #{run.1} parent=5 // pred_check
        %p594 = pneg %p593
      $region42: #{run.1} parent=5 // pred_check_branch
        %596 = sbr.rel (%p594) target = $region44
      $region43: #{run.1} parent=5 // pred_region
        %s597 = ssub.s32 %s46, 2
        // Predicated region
        $region45: #{run.1} parent=43 // pred_check
          %p598 = pneg %p131
        $region46: #{run.1} parent=43 // pred_check_branch
          %600 = sbr.rel (%p598) target = $region48
        $region47: #{run.1} parent=43 // pred_region
          %p601 = scmp.lt.s32.totalorder %s52, 2
          %s602 = scalar_select %p601, %s52, 2
          %s603 = smul.addr %s602, 3
          %s604 = smul.addr %s603, 8
          %s605 = scalar_lea.vmem %s7, %s604
        $region48: #{run.1} parent=43 // pred_fallthru
          _
        // Predicated region
        $region49: #{run.1} parent=43 // pred_check
          %p606 = pneg %p157
        $region50: #{run.1} parent=43 // pred_check_branch
          %608 = sbr.rel (%p606) target = $region52
        $region51: #{run.1} parent=43 // pred_region
          %s609 = smul.u32 2, %s52
          %p610 = scmp.lt.s32.totalorder %s609, 5
          %s611 = scalar_select %p610, %s609, 5
          %s612 = smul.addr %s611, 2
          %s613 = scalar_lea.vmem %s8, %s612
        $region52: #{run.1} parent=43 // pred_fallthru
          _
      $region44: #{run.1} parent=5 // pred_fallthru
        _
    $region6: #{run.1} parent=1 // loop_footer
      %s50 = sadd.s32 1, %s46
    $region7: #{run.1} parent=1 // loop_footer_branch
      %45 = sbr.rel target = $region3
    $region8: #{run.1} parent=1 // loop_exit
      _
    %614 = vsyncpa [#allocation9], 1
    %s615 = scalar_lea.sflag [#allocation9], 1
    %616 = vsyncpa %s615, 1

</llo_original>
